<compile_context>
chip_gen: v7x
topology: tpu7x:2x2x1
jax: 0.10.0
libtpu: 0.0.40
codegen_flags: <defaults>
</compile_context>

<pallas_src>
import jax
import jax.numpy as jnp
from jax.experimental import pallas as pl
from jax.experimental.pallas import tpu as pltpu

_TILE_ROWS = 512   # 512-row f32 tile -> ~14 MiB double-buffered, ~85% of HBM roofline


def _eltwise_kernel(a_ref, b_ref,
                    add_ref, sub_ref, mul_ref, div_ref,
                    gt_ref, lt_ref, eq_ref):
    # Cast to f32 inside the kernel (VPU cast hides under the HBM DMA).
    a = a_ref[...].astype(jnp.float32)
    b = b_ref[...].astype(jnp.float32)
    out_dt = add_ref.dtype
    add_ref[...] = (a + b).astype(out_dt)
    sub_ref[...] = (a - b).astype(out_dt)
    mul_ref[...] = (a * b).astype(out_dt)
    # NOTE: epsilon is part of the PyTorch spec: torch.div(x0, torch.add(x1, 1e-07))
    div_ref[...] = (a / (b + jnp.float32(1e-07))).astype(out_dt)
    # 1-byte comparison outputs (bool preferred, int8 fallback) — kernel is HBM-bound.
    gt_ref[...] = (a > b).astype(gt_ref.dtype)
    lt_ref[...] = (a < b).astype(lt_ref.dtype)
    eq_ref[...] = (a == b).astype(eq_ref.dtype)


def _pick_lane(n):
    """Largest lane width in {512,256,128} dividing n -> free reshape, no pad."""
    for lane in (512, 256, 128):
        if n % lane == 0:
            return lane, 0
    return 128, (-n) % 128           # rare: non-128-aligned element count


def _pick_tile_rows(rows):
    if rows < 32:
        return rows                   # tiny input: single full-extent block
    # Target >= 4 row blocks so dimension_semantics=("parallel",) can split the
    # sweep across both v7x TensorCores; keep multiples of 32 rows (int8/bool
    # native sublane tiling) and cap at the ~14 MiB 512-row tile.
    return min(_TILE_ROWS, max(32, (pl.cdiv(rows, 4) // 32) * 32))


def pt_module_forward(x0, x1):
    """Pallas implementation of PtModule.forward for two same-shaped tensors."""
    assert x0.shape == x1.shape, "both inputs must have the same shape"
    orig_shape = x0.shape

    # torch-style dtype promotion; no-op when dtypes already match (e.g. f32/f32).
    dt = jnp.promote_types(x0.dtype, x1.dtype)
    if x0.dtype != dt:
        x0 = x0.astype(dt)
    if x1.dtype != dt:
        x1 = x1.astype(dt)

    n = x0.size
    lane, pad = _pick_lane(n)

    a = x0.reshape(-1)
    b = x1.reshape(-1)
    if pad:  # rare path; aligned sizes (like the demo shape) never hit this copy
        a = jnp.pad(a, (0, pad))
        b = jnp.pad(b, (0, pad))
    rows = (n + pad) // lane
    a = a.reshape(rows, lane)
    b = b.reshape(rows, lane)

    tile_r = _pick_tile_rows(rows)
    grid = (pl.cdiv(rows, tile_r),)
    spec = pl.BlockSpec((tile_r, lane), lambda i: (i, 0))
    itemsize = jnp.dtype(dt).itemsize

    def launch(cmp_dtype):
        num_slab = jax.ShapeDtypeStruct((rows, lane), dt)
        cmp_slab = jax.ShapeDtypeStruct((rows, lane), cmp_dtype)
        out_shapes = (num_slab,) * 4 + (cmp_slab,) * 3
        return pl.pallas_call(
            _eltwise_kernel,
            out_shape=out_shapes,
            grid=grid,
            in_specs=[spec, spec],
            out_specs=tuple(spec for _ in out_shapes),
            compiler_params=pltpu.CompilerParams(
                # splits the row sweep across both TensorCores on v7x; no-op on v5e/v6e
                dimension_semantics=("parallel",),
                # 2 inputs + 4 numeric + 3 byte outputs, double-buffered: ~14 MiB max
                vmem_limit_bytes=32 << 20,
            ),
            cost_estimate=pl.CostEstimate(
                flops=8 * rows * lane,
                transcendentals=0,
                bytes_accessed=(6 * itemsize + 3) * rows * lane,
            ),
        )(a, b)

    # Preferred: write bool straight from the kernel (removes the post-kernel
    # astype HBM pass).  If this Mosaic build rejects i1 stores, fall back to
    # int8 outputs + one astype (previous, proven-working configuration).
    try:
        outs = launch(jnp.bool_)
        cmp_post = lambda y: y
    except Exception:
        outs = launch(jnp.int8)
        cmp_post = lambda y: y.astype(jnp.bool_)

    def unslab(y):
        flat = y.reshape(-1)
        if pad:
            flat = flat[:n]
        return flat.reshape(orig_shape)

    return {
        'addition': unslab(outs[0]),
        'subtraction': unslab(outs[1]),
        'multiplication': unslab(outs[2]),
        'division': unslab(outs[3]),
        'greater_than': cmp_post(unslab(outs[4])),
        'less_than': cmp_post(unslab(outs[5])),
        'equal': cmp_post(unslab(outs[6])),
    }


if __name__ == "__main__":
    key = jax.random.PRNGKey(0)
    k0, k1 = jax.random.split(key)
    shape = (2, 4, 16, 16)
    x0 = jax.random.normal(k0, shape, dtype=jnp.float32)
    x1 = jax.random.normal(k1, shape, dtype=jnp.float32)

    results = pt_module_forward(x0, x1)
    jax.block_until_ready(results)

    # correctness check against plain JAX reference (same semantics as the
    # PyTorch module, including the 1e-07 epsilon in the divisor)
    ref = {
        'addition': x0 + x1,
        'subtraction': x0 - x1,
        'multiplication': x0 * x1,
        'division': x0 / (x1 + 1e-07),
        'greater_than': x0 > x1,
        'less_than': x0 < x1,
        'equal': x0 == x1,
    }
    for name, want in ref.items():
        got = results[name]
        assert got.shape == want.shape, name
        if want.dtype == jnp.bool_:
            assert got.dtype == jnp.bool_, name
            assert bool(jnp.all(got == want)), name
        else:
            assert got.dtype == want.dtype, name
            assert bool(jnp.allclose(got, want, atol=1e-6, rtol=1e-6)), name

    print("KERNEL_OK")
</pallas_src>

<mosaic_0001>
module attributes {stable_mosaic.version = 11 : i64} {
  func.func @_eltwise_kernel(%arg0: i32, %arg1: memref<4x512xf32, #tpu.memory_space<vmem>>, %arg2: memref<4x512xf32, #tpu.memory_space<vmem>>, %arg3: memref<4x512xf32, #tpu.memory_space<vmem>>, %arg4: memref<4x512xf32, #tpu.memory_space<vmem>>, %arg5: memref<4x512xf32, #tpu.memory_space<vmem>>, %arg6: memref<4x512xf32, #tpu.memory_space<vmem>>, %arg7: memref<4x512xi32, #tpu.memory_space<vmem>>, %arg8: memref<4x512xi32, #tpu.memory_space<vmem>>, %arg9: memref<4x512xi32, #tpu.memory_space<vmem>>) attributes {dimension_semantics = [#tpu.dimension_semantics<parallel>], iteration_bounds = array<i64: 1>, scalar_prefetch = 0 : i64, scratch_operands = 0 : i64, tpu.core_type = #tpu.core_type<tc>, window_params = [{transform_indices = @transform_0, window_bounds = array<i64: 4, 512>}, {transform_indices = @transform_1, window_bounds = array<i64: 4, 512>}, {transform_indices = @transform_2, window_bounds = array<i64: 4, 512>}, {transform_indices = @transform_3, window_bounds = array<i64: 4, 512>}, {transform_indices = @transform_4, window_bounds = array<i64: 4, 512>}, {transform_indices = @transform_5, window_bounds = array<i64: 4, 512>}, {transform_indices = @transform_6, window_bounds = array<i64: 4, 512>}, {transform_indices = @transform_7, window_bounds = array<i64: 4, 512>}, {transform_indices = @transform_8, window_bounds = array<i64: 4, 512>}]} {
    %c0 = arith.constant 0 : index
    %c0_0 = arith.constant 0 : index
    %0 = vector.load %arg1[%c0, %c0_0] : memref<4x512xf32, #tpu.memory_space<vmem>>, vector<4x512xf32>
    %c0_1 = arith.constant 0 : index
    %c0_2 = arith.constant 0 : index
    %1 = vector.load %arg2[%c0_1, %c0_2] : memref<4x512xf32, #tpu.memory_space<vmem>>, vector<4x512xf32>
    %2 = arith.addf %0, %1 : vector<4x512xf32>
    %c0_3 = arith.constant 0 : index
    %c0_4 = arith.constant 0 : index
    %3 = vector.load %arg3[%c0_3, %c0_4] : memref<4x512xf32, #tpu.memory_space<vmem>>, vector<4x512xf32>
    tpu.vector_store %arg3[%c0_3, %c0_4], %2 {strides = array<i32>} : memref<4x512xf32, #tpu.memory_space<vmem>>, vector<4x512xf32>,
    %4 = arith.subf %0, %1 : vector<4x512xf32>
    %c0_5 = arith.constant 0 : index
    %c0_6 = arith.constant 0 : index
    %5 = vector.load %arg4[%c0_5, %c0_6] : memref<4x512xf32, #tpu.memory_space<vmem>>, vector<4x512xf32>
    tpu.vector_store %arg4[%c0_5, %c0_6], %4 {strides = array<i32>} : memref<4x512xf32, #tpu.memory_space<vmem>>, vector<4x512xf32>,
    %6 = arith.mulf %0, %1 : vector<4x512xf32>
    %c0_7 = arith.constant 0 : index
    %c0_8 = arith.constant 0 : index
    %7 = vector.load %arg5[%c0_7, %c0_8] : memref<4x512xf32, #tpu.memory_space<vmem>>, vector<4x512xf32>
    tpu.vector_store %arg5[%c0_7, %c0_8], %6 {strides = array<i32>} : memref<4x512xf32, #tpu.memory_space<vmem>>, vector<4x512xf32>,
    %cst = arith.constant 1.000000e-07 : f32
    %8 = vector.broadcast %cst : f32 to vector<4x512xf32>
    %9 = arith.addf %1, %8 : vector<4x512xf32>
    %10 = arith.divf %0, %9 : vector<4x512xf32>
    %c0_9 = arith.constant 0 : index
    %c0_10 = arith.constant 0 : index
    %11 = vector.load %arg6[%c0_9, %c0_10] : memref<4x512xf32, #tpu.memory_space<vmem>>, vector<4x512xf32>
    tpu.vector_store %arg6[%c0_9, %c0_10], %10 {strides = array<i32>} : memref<4x512xf32, #tpu.memory_space<vmem>>, vector<4x512xf32>,
    %12 = arith.cmpf ogt, %0, %1 : vector<4x512xf32>
    %c0_11 = arith.constant 0 : index
    %c0_12 = arith.constant 0 : index
    %13 = vector.load %arg7[%c0_11, %c0_12] : memref<4x512xi32, #tpu.memory_space<vmem>>, vector<4x512xi32>
    %14 = arith.extui %12 : vector<4x512xi1> to vector<4x512xi32>
    %cst_13 = arith.constant dense<0> : vector<4x512xi32>
    %15 = arith.cmpi ne, %13, %cst_13 : vector<4x512xi32>
    tpu.vector_store %arg7[%c0_11, %c0_12], %14 {strides = array<i32>} : memref<4x512xi32, #tpu.memory_space<vmem>>, vector<4x512xi32>,
    %16 = arith.cmpf olt, %0, %1 : vector<4x512xf32>
    %c0_14 = arith.constant 0 : index
    %c0_15 = arith.constant 0 : index
    %17 = vector.load %arg8[%c0_14, %c0_15] : memref<4x512xi32, #tpu.memory_space<vmem>>, vector<4x512xi32>
    %18 = arith.extui %16 : vector<4x512xi1> to vector<4x512xi32>
    %cst_16 = arith.constant dense<0> : vector<4x512xi32>
    %19 = arith.cmpi ne, %17, %cst_16 : vector<4x512xi32>
    tpu.vector_store %arg8[%c0_14, %c0_15], %18 {strides = array<i32>} : memref<4x512xi32, #tpu.memory_space<vmem>>, vector<4x512xi32>,
    %20 = arith.cmpf oeq, %0, %1 : vector<4x512xf32>
    %c0_17 = arith.constant 0 : index
    %c0_18 = arith.constant 0 : index
    %21 = vector.load %arg9[%c0_17, %c0_18] : memref<4x512xi32, #tpu.memory_space<vmem>>, vector<4x512xi32>
    %22 = arith.extui %20 : vector<4x512xi1> to vector<4x512xi32>
    %cst_19 = arith.constant dense<0> : vector<4x512xi32>
    %23 = arith.cmpi ne, %21, %cst_19 : vector<4x512xi32>
    tpu.vector_store %arg9[%c0_17, %c0_18], %22 {strides = array<i32>} : memref<4x512xi32, #tpu.memory_space<vmem>>, vector<4x512xi32>,
    return
  }
  func.func @transform_0(%arg0: i32) -> (i32, i32) {
    %c0_i32 = arith.constant 0 : i32
    %c0_i32_0 = arith.constant 0 : i32
    return %arg0, %c0_i32 : i32, i32
  }
  func.func @transform_1(%arg0: i32) -> (i32, i32) {
    %c0_i32 = arith.constant 0 : i32
    %c0_i32_0 = arith.constant 0 : i32
    return %arg0, %c0_i32 : i32, i32
  }
  func.func @transform_2(%arg0: i32) -> (i32, i32) {
    %c0_i32 = arith.constant 0 : i32
    %c0_i32_0 = arith.constant 0 : i32
    return %arg0, %c0_i32 : i32, i32
  }
  func.func @transform_3(%arg0: i32) -> (i32, i32) {
    %c0_i32 = arith.constant 0 : i32
    %c0_i32_0 = arith.constant 0 : i32
    return %arg0, %c0_i32 : i32, i32
  }
  func.func @transform_4(%arg0: i32) -> (i32, i32) {
    %c0_i32 = arith.constant 0 : i32
    %c0_i32_0 = arith.constant 0 : i32
    return %arg0, %c0_i32 : i32, i32
  }
  func.func @transform_5(%arg0: i32) -> (i32, i32) {
    %c0_i32 = arith.constant 0 : i32
    %c0_i32_0 = arith.constant 0 : i32
    return %arg0, %c0_i32 : i32, i32
  }
  func.func @transform_6(%arg0: i32) -> (i32, i32) {
    %c0_i32 = arith.constant 0 : i32
    %c0_i32_0 = arith.constant 0 : i32
    return %arg0, %c0_i32 : i32, i32
  }
  func.func @transform_7(%arg0: i32) -> (i32, i32) {
    %c0_i32 = arith.constant 0 : i32
    %c0_i32_0 = arith.constant 0 : i32
    return %arg0, %c0_i32 : i32, i32
  }
  func.func @transform_8(%arg0: i32) -> (i32, i32) {
    %c0_i32 = arith.constant 0 : i32
    %c0_i32_0 = arith.constant 0 : i32
    return %arg0, %c0_i32 : i32, i32
  }
}

module attributes {stable_mosaic.version = 11 : i64} {
  func.func @_eltwise_kernel(%arg0: i32, %arg1: memref<4x512xf32, #tpu.memory_space<vmem>>, %arg2: memref<4x512xf32, #tpu.memory_space<vmem>>, %arg3: memref<4x512xf32, #tpu.memory_space<vmem>>, %arg4: memref<4x512xf32, #tpu.memory_space<vmem>>, %arg5: memref<4x512xf32, #tpu.memory_space<vmem>>, %arg6: memref<4x512xf32, #tpu.memory_space<vmem>>, %arg7: memref<4x512xi8, #tpu.memory_space<vmem>>, %arg8: memref<4x512xi8, #tpu.memory_space<vmem>>, %arg9: memref<4x512xi8, #tpu.memory_space<vmem>>) attributes {dimension_semantics = [#tpu.dimension_semantics<parallel>], iteration_bounds = array<i64: 1>, scalar_prefetch = 0 : i64, scratch_operands = 0 : i64, tpu.core_type = #tpu.core_type<tc>, window_params = [{transform_indices = @transform_0, window_bounds = array<i64: 4, 512>}, {transform_indices = @transform_1, window_bounds = array<i64: 4, 512>}, {transform_indices = @transform_2, window_bounds = array<i64: 4, 512>}, {transform_indices = @transform_3, window_bounds = array<i64: 4, 512>}, {transform_indices = @transform_4, window_bounds = array<i64: 4, 512>}, {transform_indices = @transform_5, window_bounds = array<i64: 4, 512>}, {transform_indices = @transform_6, window_bounds = array<i64: 4, 512>}, {transform_indices = @transform_7, window_bounds = array<i64: 4, 512>}, {transform_indices = @transform_8, window_bounds = array<i64: 4, 512>}]} {
    %c0 = arith.constant 0 : index
    %c0_0 = arith.constant 0 : index
    %0 = vector.load %arg1[%c0, %c0_0] : memref<4x512xf32, #tpu.memory_space<vmem>>, vector<4x512xf32>
    %c0_1 = arith.constant 0 : index
    %c0_2 = arith.constant 0 : index
    %1 = vector.load %arg2[%c0_1, %c0_2] : memref<4x512xf32, #tpu.memory_space<vmem>>, vector<4x512xf32>
    %2 = arith.addf %0, %1 : vector<4x512xf32>
    %c0_3 = arith.constant 0 : index
    %c0_4 = arith.constant 0 : index
    %3 = vector.load %arg3[%c0_3, %c0_4] : memref<4x512xf32, #tpu.memory_space<vmem>>, vector<4x512xf32>
    tpu.vector_store %arg3[%c0_3, %c0_4], %2 {strides = array<i32>} : memref<4x512xf32, #tpu.memory_space<vmem>>, vector<4x512xf32>,
    %4 = arith.subf %0, %1 : vector<4x512xf32>
    %c0_5 = arith.constant 0 : index
    %c0_6 = arith.constant 0 : index
    %5 = vector.load %arg4[%c0_5, %c0_6] : memref<4x512xf32, #tpu.memory_space<vmem>>, vector<4x512xf32>
    tpu.vector_store %arg4[%c0_5, %c0_6], %4 {strides = array<i32>} : memref<4x512xf32, #tpu.memory_space<vmem>>, vector<4x512xf32>,
    %6 = arith.mulf %0, %1 : vector<4x512xf32>
    %c0_7 = arith.constant 0 : index
    %c0_8 = arith.constant 0 : index
    %7 = vector.load %arg5[%c0_7, %c0_8] : memref<4x512xf32, #tpu.memory_space<vmem>>, vector<4x512xf32>
    tpu.vector_store %arg5[%c0_7, %c0_8], %6 {strides = array<i32>} : memref<4x512xf32, #tpu.memory_space<vmem>>, vector<4x512xf32>,
    %cst = arith.constant 1.000000e-07 : f32
    %8 = vector.broadcast %cst : f32 to vector<4x512xf32>
    %9 = arith.addf %1, %8 : vector<4x512xf32>
    %10 = arith.divf %0, %9 : vector<4x512xf32>
    %c0_9 = arith.constant 0 : index
    %c0_10 = arith.constant 0 : index
    %11 = vector.load %arg6[%c0_9, %c0_10] : memref<4x512xf32, #tpu.memory_space<vmem>>, vector<4x512xf32>
    tpu.vector_store %arg6[%c0_9, %c0_10], %10 {strides = array<i32>} : memref<4x512xf32, #tpu.memory_space<vmem>>, vector<4x512xf32>,
    %12 = arith.cmpf ogt, %0, %1 : vector<4x512xf32>
    %13 = arith.extui %12 : vector<4x512xi1> to vector<4x512xi8>
    %c0_11 = arith.constant 0 : index
    %c0_12 = arith.constant 0 : index
    %14 = vector.load %arg7[%c0_11, %c0_12] : memref<4x512xi8, #tpu.memory_space<vmem>>, vector<4x512xi8>
    tpu.vector_store %arg7[%c0_11, %c0_12], %13 {strides = array<i32>} : memref<4x512xi8, #tpu.memory_space<vmem>>, vector<4x512xi8>,
    %15 = arith.cmpf olt, %0, %1 : vector<4x512xf32>
    %16 = arith.extui %15 : vector<4x512xi1> to vector<4x512xi8>
    %c0_13 = arith.constant 0 : index
    %c0_14 = arith.constant 0 : index
    %17 = vector.load %arg8[%c0_13, %c0_14] : memref<4x512xi8, #tpu.memory_space<vmem>>, vector<4x512xi8>
    tpu.vector_store %arg8[%c0_13, %c0_14], %16 {strides = array<i32>} : memref<4x512xi8, #tpu.memory_space<vmem>>, vector<4x512xi8>,
    %18 = arith.cmpf oeq, %0, %1 : vector<4x512xf32>
    %19 = arith.extui %18 : vector<4x512xi1> to vector<4x512xi8>
    %c0_15 = arith.constant 0 : index
    %c0_16 = arith.constant 0 : index
    %20 = vector.load %arg9[%c0_15, %c0_16] : memref<4x512xi8, #tpu.memory_space<vmem>>, vector<4x512xi8>
    tpu.vector_store %arg9[%c0_15, %c0_16], %19 {strides = array<i32>} : memref<4x512xi8, #tpu.memory_space<vmem>>, vector<4x512xi8>,
    return
  }
  func.func @transform_0(%arg0: i32) -> (i32, i32) {
    %c0_i32 = arith.constant 0 : i32
    %c0_i32_0 = arith.constant 0 : i32
    return %arg0, %c0_i32 : i32, i32
  }
  func.func @transform_1(%arg0: i32) -> (i32, i32) {
    %c0_i32 = arith.constant 0 : i32
    %c0_i32_0 = arith.constant 0 : i32
    return %arg0, %c0_i32 : i32, i32
  }
  func.func @transform_2(%arg0: i32) -> (i32, i32) {
    %c0_i32 = arith.constant 0 : i32
    %c0_i32_0 = arith.constant 0 : i32
    return %arg0, %c0_i32 : i32, i32
  }
  func.func @transform_3(%arg0: i32) -> (i32, i32) {
    %c0_i32 = arith.constant 0 : i32
    %c0_i32_0 = arith.constant 0 : i32
    return %arg0, %c0_i32 : i32, i32
  }
  func.func @transform_4(%arg0: i32) -> (i32, i32) {
    %c0_i32 = arith.constant 0 : i32
    %c0_i32_0 = arith.constant 0 : i32
    return %arg0, %c0_i32 : i32, i32
  }
  func.func @transform_5(%arg0: i32) -> (i32, i32) {
    %c0_i32 = arith.constant 0 : i32
    %c0_i32_0 = arith.constant 0 : i32
    return %arg0, %c0_i32 : i32, i32
  }
  func.func @transform_6(%arg0: i32) -> (i32, i32) {
    %c0_i32 = arith.constant 0 : i32
    %c0_i32_0 = arith.constant 0 : i32
    return %arg0, %c0_i32 : i32, i32
  }
  func.func @transform_7(%arg0: i32) -> (i32, i32) {
    %c0_i32 = arith.constant 0 : i32
    %c0_i32_0 = arith.constant 0 : i32
    return %arg0, %c0_i32 : i32, i32
  }
  func.func @transform_8(%arg0: i32) -> (i32, i32) {
    %c0_i32 = arith.constant 0 : i32
    %c0_i32_0 = arith.constant 0 : i32
    return %arg0, %c0_i32 : i32, i32
  }
}

</mosaic_0001>

<llo_original>
// kernel: tpu_custom_call.1
$region0: #{tpu_custom_call.1}
  #allocation0 [shape = 'u32[]', space=smem, size = 0x4, offset = 0x4, fixed_abs, tag = 'smem constant byte address 0x4 - core index']
  #allocation1 [shape = 'u32[144,128]{1,0:T(1,128)}', space=vmem, size = 0x12000, scoped, tag = 'internal scratch']
  %s0 = inlined_call_operand.hbm [shape: f32[4,512], index: 0, kind: input, shape index: {}]
  %s1 = inlined_call_operand.hbm [shape: f32[4,512], index: 1, kind: input, shape index: {}]
  %s2 = inlined_call_operand.hbm [shape: f32[4,512], index: 2, kind: output, shape index: {0}]
  %s3 = inlined_call_operand.hbm [shape: f32[4,512], index: 3, kind: output, shape index: {1}]
  %s4 = inlined_call_operand.hbm [shape: f32[4,512], index: 4, kind: output, shape index: {2}]
  %s5 = inlined_call_operand.hbm [shape: f32[4,512], index: 5, kind: output, shape index: {3}]
  %s6 = inlined_call_operand.vmem [shape: s32[4,512], index: 6, kind: output, shape index: {4}]
  %s7 = inlined_call_operand.vmem [shape: s32[4,512], index: 7, kind: output, shape index: {5}]
  %s8 = inlined_call_operand.vmem [shape: s32[4,512], index: 8, kind: output, shape index: {6}]
  %9 = xla_tuple %s2, %s3, %s4, %s5, %s6, %s7, %s8
  %s10 = sld [smem:[#allocation0]]
  $region74: #{tpu_custom_call.1} parent=0
    _
  %s12 = ssub.s32 1, %s10
  %s13 = scalar_select 0, %s12, %s10
  $region1: #{tpu_custom_call.1} parent=0
    #allocation2 [shape = 'u8[8192]{0}', space=vmem, size = 0x2000, scoped, tag = 'input window, operand 0, single buffered']
    #allocation3 [shape = 's32[1]{0}', space=sflag, size = 0x4, scoped, tag = 'scoped memory for tpu_custom_call.1']
    #allocation4 [shape = 's32[1]{0}', space=sflag, size = 0x4, scoped, tag = 'scoped memory for tpu_custom_call.1']
    #allocation5 [shape = 'u8[8192]{0}', space=vmem, size = 0x2000, scoped, tag = 'input window, operand 1, single buffered']
    #allocation6 [shape = 's32[1]{0}', space=sflag, size = 0x4, scoped, tag = 'scoped memory for tpu_custom_call.1']
    #allocation7 [shape = 'u8[8192]{0}', space=vmem, size = 0x2000, scoped, tag = 'output window, operand 0, single buffered']
    #allocation8 [shape = 'u8[8192]{0}', space=vmem, size = 0x2000, scoped, tag = 'output window, operand 1, single buffered']
    #allocation9 [shape = 's32[1]{0}', space=sflag, size = 0x4, scoped, tag = 'scoped memory for tpu_custom_call.1']
    #allocation10 [shape = 'u8[8192]{0}', space=vmem, size = 0x2000, scoped, tag = 'output window, operand 2, single buffered']
    #allocation11 [shape = 'u8[8192]{0}', space=vmem, size = 0x2000, scoped, tag = 'output window, operand 3, single buffered']
    #allocation12 [shape = 's32[1]{0}', space=sflag, size = 0x4, scoped, tag = 'scoped memory for tpu_custom_call.1']
    %14 = vsyncpa [#allocation3], 0
    %15 = vsyncpa [#allocation6], 0
    %16 = vsyncpa [#allocation4], 0
    %17 = vsyncpa [#allocation9], 0
    %18 = vsyncpa [#allocation12], 0
    // Predicated region
    $region2: #{tpu_custom_call.1} parent=1 // pred_check
      _
    $region3: #{tpu_custom_call.1} parent=1 // pred_check_branch
      %20 = sbr.rel (0) target = $region5
    $region4: #{tpu_custom_call.1} parent=1 // pred_region
      %s22 = ssub.s32 256, 256
      %23 = vsyncadd [#allocation3], %s22
      %s25 = sshll.u32 [#allocation2], 4
      %s26 = int_to_ptr.vmem [resolvable:$true] %s25
      %28 = dma.hbm_to_vmem [thread:$0]  %s0, 256, %s26, [#allocation3]
    $region5: #{tpu_custom_call.1} parent=1 // pred_fallthru
      _
    // Predicated region
    $region6: #{tpu_custom_call.1} parent=1 // pred_check
      _
    $region7: #{tpu_custom_call.1} parent=1 // pred_check_branch
      %30 = sbr.rel (0) target = $region9
    $region8: #{tpu_custom_call.1} parent=1 // pred_region
      %s32 = ssub.s32 256, 256
      %33 = vsyncadd [#allocation6], %s32
      %s35 = sshll.u32 [#allocation5], 4
      %s36 = int_to_ptr.vmem [resolvable:$true] %s35
      %38 = dma.hbm_to_vmem [thread:$0]  %s1, 256, %s36, [#allocation6]
    $region9: #{tpu_custom_call.1} parent=1 // pred_fallthru
      _
    // Predicated region
    $region10: #{tpu_custom_call.1} parent=1 // pred_check
      _
    $region11: #{tpu_custom_call.1} parent=1 // pred_check_branch
      %40 = sbr.rel (0) target = $region13
    $region12: #{tpu_custom_call.1} parent=1 // pred_region
      %41 = dma.done [#allocation3], 256
    $region13: #{tpu_custom_call.1} parent=1 // pred_fallthru
      _
    // Predicated region
    $region14: #{tpu_custom_call.1} parent=1 // pred_check
      _
    $region15: #{tpu_custom_call.1} parent=1 // pred_check_branch
      %43 = sbr.rel (0) target = $region17
    $region16: #{tpu_custom_call.1} parent=1 // pred_region
      %44 = dma.done [#allocation6], 256
    $region17: #{tpu_custom_call.1} parent=1 // pred_fallthru
      _
    %v45 = vld [vmem:[#allocation2] sm:$0xff]
    %v46 = vld [vmem:[#allocation2 + $0x8] sm:$0xff]
    %v47 = vld [vmem:[#allocation5] sm:$0xff]
    %v48 = vld [vmem:[#allocation5 + $0x8] sm:$0xff]
    %v49 = vadd.f32 %v45, %v47
    %v50 = vadd.f32 %v46, %v48
    %51 = vst [vmem:[#allocation7] sm:$0xff] %v49
    %52 = vst [vmem:[#allocation7 + $0x8] sm:$0xff] %v50
    %v53 = vsub.f32 %v45, %v47
    %v54 = vsub.f32 %v46, %v48
    %55 = vst [vmem:[#allocation8] sm:$0xff] %v53
    %56 = vst [vmem:[#allocation8 + $0x8] sm:$0xff] %v54
    %v57 = vmul.f32 %v45, %v47
    %v58 = vmul.f32 %v46, %v48
    %59 = vst [vmem:[#allocation10] sm:$0xff] %v57
    %60 = vst [vmem:[#allocation10 + $0x8] sm:$0xff] %v58
    %v61 = vadd.f32 %v47, 1e-07
    %v62 = vadd.f32 %v48, 1e-07
    %v63 = vrcp.pop %v61
    %v64 = vmul.f32 %v45, %v63
    %v65 = vrcp.pop %v62
    %v66 = vmul.f32 %v46, %v65
    %67 = vst [vmem:[#allocation11] sm:$0xff] %v64
    %68 = vst [vmem:[#allocation11 + $0x8] sm:$0xff] %v66
    %vm69 = vcmp.gt.f32.partialorder %v45, %v47
    %vm70 = vcmp.gt.f32.partialorder %v46, %v48
    %v71 = vsel %vm69, 1, 0
    %v72 = vsel %vm70, 1, 0
    %73 = vst [vmem:[%s6] sm:$0xff] %v71
    %74 = vst [vmem:[%s6 + $0x8] sm:$0xff] %v72
    %vm75 = vcmp.lt.f32.partialorder %v45, %v47
    %vm76 = vcmp.lt.f32.partialorder %v46, %v48
    %v77 = vsel %vm75, 1, 0
    %v78 = vsel %vm76, 1, 0
    %79 = vst [vmem:[%s7] sm:$0xff] %v77
    %80 = vst [vmem:[%s7 + $0x8] sm:$0xff] %v78
    %vm81 = vcmp.eq.f32.partialorder %v45, %v47
    %vm82 = vcmp.eq.f32.partialorder %v46, %v48
    %v83 = vsel %vm81, 1, 0
    %v84 = vsel %vm82, 1, 0
    %85 = vst [vmem:[%s8] sm:$0xff] %v83
    %86 = vst [vmem:[%s8 + $0x8] sm:$0xff] %v84
    // Predicated region
    $region18: #{tpu_custom_call.1} parent=1 // pred_check
      _
    $region19: #{tpu_custom_call.1} parent=1 // pred_check_branch
      %88 = sbr.rel (0) target = $region21
    $region20: #{tpu_custom_call.1} parent=1 // pred_region
      %s90 = ssub.s32 256, 256
      %91 = vsyncadd [#allocation4], %s90
      %s93 = sshll.u32 [#allocation7], 4
      %s94 = int_to_ptr.vmem [resolvable:$true] %s93
      %96 = dma.vmem_to_hbm [thread:$0]  %s94, 256, %s2, [#allocation4]
    $region21: #{tpu_custom_call.1} parent=1 // pred_fallthru
      _
    // Predicated region
    $region22: #{tpu_custom_call.1} parent=1 // pred_check
      _
    $region23: #{tpu_custom_call.1} parent=1 // pred_check_branch
      %98 = sbr.rel (0) target = $region25
    $region24: #{tpu_custom_call.1} parent=1 // pred_region
      %s100 = ssub.s32 256, 256
      %101 = vsyncadd [#allocation9], %s100
      %s103 = sshll.u32 [#allocation8], 4
      %s104 = int_to_ptr.vmem [resolvable:$true] %s103
      %106 = dma.vmem_to_hbm [thread:$0]  %s104, 256, %s3, [#allocation9]
    $region25: #{tpu_custom_call.1} parent=1 // pred_fallthru
      _
    // Predicated region
    $region26: #{tpu_custom_call.1} parent=1 // pred_check
      _
    $region27: #{tpu_custom_call.1} parent=1 // pred_check_branch
      %108 = sbr.rel (0) target = $region29
    $region28: #{tpu_custom_call.1} parent=1 // pred_region
      %s110 = ssub.s32 256, 256
      %111 = vsyncadd [#allocation9], %s110
      %s113 = sshll.u32 [#allocation10], 4
      %s114 = int_to_ptr.vmem [resolvable:$true] %s113
      %116 = dma.vmem_to_hbm [thread:$0]  %s114, 256, %s4, [#allocation9]
    $region29: #{tpu_custom_call.1} parent=1 // pred_fallthru
      _
    // Predicated region
    $region30: #{tpu_custom_call.1} parent=1 // pred_check
      _
    $region31: #{tpu_custom_call.1} parent=1 // pred_check_branch
      %118 = sbr.rel (0) target = $region33
    $region32: #{tpu_custom_call.1} parent=1 // pred_region
      %s120 = ssub.s32 256, 256
      %121 = vsyncadd [#allocation12], %s120
      %s123 = sshll.u32 [#allocation11], 4
      %s124 = int_to_ptr.vmem [resolvable:$true] %s123
      %126 = dma.vmem_to_hbm [thread:$0]  %s124, 256, %s5, [#allocation12]
    $region33: #{tpu_custom_call.1} parent=1 // pred_fallthru
      _
    // Predicated region
    $region34: #{tpu_custom_call.1} parent=1 // pred_check
      _
    $region35: #{tpu_custom_call.1} parent=1 // pred_check_branch
      %128 = sbr.rel (0) target = $region37
    $region36: #{tpu_custom_call.1} parent=1 // pred_region
      _
    $region37: #{tpu_custom_call.1} parent=1 // pred_fallthru
      _
    // Predicated region
    $region38: #{tpu_custom_call.1} parent=1 // pred_check
      _
    $region39: #{tpu_custom_call.1} parent=1 // pred_check_branch
      %130 = sbr.rel (0) target = $region41
    $region40: #{tpu_custom_call.1} parent=1 // pred_region
      _
    $region41: #{tpu_custom_call.1} parent=1 // pred_fallthru
      _
    // Predicated region
    $region42: #{tpu_custom_call.1} parent=1 // pred_check
      _
    $region43: #{tpu_custom_call.1} parent=1 // pred_check_branch
      %132 = sbr.rel (0) target = $region45
    $region44: #{tpu_custom_call.1} parent=1 // pred_region
      _
    $region45: #{tpu_custom_call.1} parent=1 // pred_fallthru
      _
    // Predicated region
    $region46: #{tpu_custom_call.1} parent=1 // pred_check
      _
    $region47: #{tpu_custom_call.1} parent=1 // pred_check_branch
      %134 = sbr.rel (0) target = $region49
    $region48: #{tpu_custom_call.1} parent=1 // pred_region
      %135 = dma.done [#allocation4], 256
    $region49: #{tpu_custom_call.1} parent=1 // pred_fallthru
      _
    // Predicated region
    $region50: #{tpu_custom_call.1} parent=1 // pred_check
      _
    $region51: #{tpu_custom_call.1} parent=1 // pred_check_branch
      %137 = sbr.rel (0) target = $region53
    $region52: #{tpu_custom_call.1} parent=1 // pred_region
      %138 = dma.done [#allocation9], 256
    $region53: #{tpu_custom_call.1} parent=1 // pred_fallthru
      _
    // Predicated region
    $region54: #{tpu_custom_call.1} parent=1 // pred_check
      _
    $region55: #{tpu_custom_call.1} parent=1 // pred_check_branch
      %140 = sbr.rel (0) target = $region57
    $region56: #{tpu_custom_call.1} parent=1 // pred_region
      %141 = dma.done [#allocation9], 256
    $region57: #{tpu_custom_call.1} parent=1 // pred_fallthru
      _
    // Predicated region
    $region58: #{tpu_custom_call.1} parent=1 // pred_check
      _
    $region59: #{tpu_custom_call.1} parent=1 // pred_check_branch
      %143 = sbr.rel (0) target = $region61
    $region60: #{tpu_custom_call.1} parent=1 // pred_region
      %144 = dma.done [#allocation12], 256
    $region61: #{tpu_custom_call.1} parent=1 // pred_fallthru
      _
    // Predicated region
    $region62: #{tpu_custom_call.1} parent=1 // pred_check
      _
    $region63: #{tpu_custom_call.1} parent=1 // pred_check_branch
      %146 = sbr.rel (0) target = $region65
    $region64: #{tpu_custom_call.1} parent=1 // pred_region
      _
    $region65: #{tpu_custom_call.1} parent=1 // pred_fallthru
      _
    // Predicated region
    $region66: #{tpu_custom_call.1} parent=1 // pred_check
      _
    $region67: #{tpu_custom_call.1} parent=1 // pred_check_branch
      %148 = sbr.rel (0) target = $region69
    $region68: #{tpu_custom_call.1} parent=1 // pred_region
      _
    $region69: #{tpu_custom_call.1} parent=1 // pred_fallthru
      _
    // Predicated region
    $region70: #{tpu_custom_call.1} parent=1 // pred_check
      _
    $region71: #{tpu_custom_call.1} parent=1 // pred_check_branch
      %150 = sbr.rel (0) target = $region73
    $region72: #{tpu_custom_call.1} parent=1 // pred_region
      _
    $region73: #{tpu_custom_call.1} parent=1 // pred_fallthru
      _
    %151 = vsyncpa [#allocation3], 1
    %152 = vsyncpa [#allocation6], 1
    %153 = vsyncpa [#allocation4], 1
    %154 = vsyncpa [#allocation9], 1
    %155 = vsyncpa [#allocation12], 1

// kernel: tpu_custom_call.1
$region0: #{tpu_custom_call.1}
  #allocation0 [shape = 'u32[]', space=smem, size = 0x4, offset = 0x4, fixed_abs, tag = 'smem constant byte address 0x4 - core index']
  #allocation1 [shape = 'u32[144,128]{1,0:T(1,128)}', space=vmem, size = 0x12000, scoped, tag = 'internal scratch']
  %s0 = inlined_call_operand.hbm [shape: f32[4,512], index: 0, kind: input, shape index: {}]
  %s1 = inlined_call_operand.hbm [shape: f32[4,512], index: 1, kind: input, shape index: {}]
  %s2 = inlined_call_operand.hbm [shape: f32[4,512], index: 2, kind: output, shape index: {0}]
  %s3 = inlined_call_operand.hbm [shape: f32[4,512], index: 3, kind: output, shape index: {1}]
  %s4 = inlined_call_operand.hbm [shape: f32[4,512], index: 4, kind: output, shape index: {2}]
  %s5 = inlined_call_operand.hbm [shape: f32[4,512], index: 5, kind: output, shape index: {3}]
  %s6 = inlined_call_operand.hbm [shape: s8[4,512], index: 6, kind: output, shape index: {4}]
  %s7 = inlined_call_operand.hbm [shape: s8[4,512], index: 7, kind: output, shape index: {5}]
  %s8 = inlined_call_operand.hbm [shape: s8[4,512], index: 8, kind: output, shape index: {6}]
  %9 = xla_tuple %s2, %s3, %s4, %s5, %s6, %s7, %s8
  %s10 = sld [smem:[#allocation0]]
  $region74: #{tpu_custom_call.1} parent=0
    _
  %s12 = ssub.s32 1, %s10
  %s13 = scalar_select 0, %s12, %s10
  $region1: #{tpu_custom_call.1} parent=0
    #allocation2 [shape = 'u8[8192]{0}', space=vmem, size = 0x2000, scoped, tag = 'input window, operand 0, single buffered']
    #allocation3 [shape = 's32[1]{0}', space=sflag, size = 0x4, scoped, tag = 'scoped memory for tpu_custom_call.1']
    #allocation4 [shape = 's32[1]{0}', space=sflag, size = 0x4, scoped, tag = 'scoped memory for tpu_custom_call.1']
    #allocation5 [shape = 'u8[8192]{0}', space=vmem, size = 0x2000, scoped, tag = 'input window, operand 1, single buffered']
    #allocation6 [shape = 's32[1]{0}', space=sflag, size = 0x4, scoped, tag = 'scoped memory for tpu_custom_call.1']
    #allocation7 [shape = 'u8[8192]{0}', space=vmem, size = 0x2000, scoped, tag = 'output window, operand 0, single buffered']
    #allocation8 [shape = 'u8[8192]{0}', space=vmem, size = 0x2000, scoped, tag = 'output window, operand 1, single buffered']
    #allocation9 [shape = 's32[1]{0}', space=sflag, size = 0x4, scoped, tag = 'scoped memory for tpu_custom_call.1']
    #allocation10 [shape = 'u8[8192]{0}', space=vmem, size = 0x2000, scoped, tag = 'output window, operand 2, single buffered']
    #allocation11 [shape = 'u8[8192]{0}', space=vmem, size = 0x2000, scoped, tag = 'output window, operand 3, single buffered']
    #allocation12 [shape = 's32[1]{0}', space=sflag, size = 0x4, scoped, tag = 'scoped memory for tpu_custom_call.1']
    #allocation13 [shape = 'u8[2048]{0}', space=vmem, size = 0x800, scoped, tag = 'output window, operand 4, single buffered']
    #allocation14 [shape = 'u8[2048]{0}', space=vmem, size = 0x800, scoped, tag = 'output window, operand 5, single buffered']
    #allocation15 [shape = 's32[1]{0}', space=sflag, size = 0x4, scoped, tag = 'scoped memory for tpu_custom_call.1']
    #allocation16 [shape = 'u8[2048]{0}', space=vmem, size = 0x800, scoped, tag = 'output window, operand 6, single buffered']
    %14 = vsyncpa [#allocation3], 0
    %15 = vsyncpa [#allocation6], 0
    %16 = vsyncpa [#allocation4], 0
    %17 = vsyncpa [#allocation9], 0
    %18 = vsyncpa [#allocation12], 0
    %19 = vsyncpa [#allocation15], 0
    // Predicated region
    $region2: #{tpu_custom_call.1} parent=1 // pred_check
      _
    $region3: #{tpu_custom_call.1} parent=1 // pred_check_branch
      %21 = sbr.rel (0) target = $region5
    $region4: #{tpu_custom_call.1} parent=1 // pred_region
      %s23 = ssub.s32 256, 256
      %24 = vsyncadd [#allocation3], %s23
      %s26 = sshll.u32 [#allocation2], 4
      %s27 = int_to_ptr.vmem [resolvable:$true] %s26
      %29 = dma.hbm_to_vmem [thread:$0]  %s0, 256, %s27, [#allocation3]
    $region5: #{tpu_custom_call.1} parent=1 // pred_fallthru
      _
    // Predicated region
    $region6: #{tpu_custom_call.1} parent=1 // pred_check
      _
    $region7: #{tpu_custom_call.1} parent=1 // pred_check_branch
      %31 = sbr.rel (0) target = $region9
    $region8: #{tpu_custom_call.1} parent=1 // pred_region
      %s33 = ssub.s32 256, 256
      %34 = vsyncadd [#allocation6], %s33
      %s36 = sshll.u32 [#allocation5], 4
      %s37 = int_to_ptr.vmem [resolvable:$true] %s36
      %39 = dma.hbm_to_vmem [thread:$0]  %s1, 256, %s37, [#allocation6]
    $region9: #{tpu_custom_call.1} parent=1 // pred_fallthru
      _
    // Predicated region
    $region10: #{tpu_custom_call.1} parent=1 // pred_check
      _
    $region11: #{tpu_custom_call.1} parent=1 // pred_check_branch
      %41 = sbr.rel (0) target = $region13
    $region12: #{tpu_custom_call.1} parent=1 // pred_region
      %42 = dma.done [#allocation3], 256
    $region13: #{tpu_custom_call.1} parent=1 // pred_fallthru
      _
    // Predicated region
    $region14: #{tpu_custom_call.1} parent=1 // pred_check
      _
    $region15: #{tpu_custom_call.1} parent=1 // pred_check_branch
      %44 = sbr.rel (0) target = $region17
    $region16: #{tpu_custom_call.1} parent=1 // pred_region
      %45 = dma.done [#allocation6], 256
    $region17: #{tpu_custom_call.1} parent=1 // pred_fallthru
      _
    %v48 = vld [vmem:[#allocation2] sm:$0xff]
    %v49 = vld [vmem:[#allocation2 + $0x8] sm:$0xff]
    %v50 = vld [vmem:[#allocation5] sm:$0xff]
    %v51 = vld [vmem:[#allocation5 + $0x8] sm:$0xff]
    %v52 = vadd.f32 %v48, %v50
    %v53 = vadd.f32 %v49, %v51
    %54 = vst [vmem:[#allocation7] sm:$0xff] %v52
    %55 = vst [vmem:[#allocation7 + $0x8] sm:$0xff] %v53
    %v56 = vsub.f32 %v48, %v50
    %v57 = vsub.f32 %v49, %v51
    %58 = vst [vmem:[#allocation8] sm:$0xff] %v56
    %59 = vst [vmem:[#allocation8 + $0x8] sm:$0xff] %v57
    %v60 = vmul.f32 %v48, %v50
    %v61 = vmul.f32 %v49, %v51
    %62 = vst [vmem:[#allocation10] sm:$0xff] %v60
    %63 = vst [vmem:[#allocation10 + $0x8] sm:$0xff] %v61
    %v64 = vadd.f32 %v50, 1e-07
    %v65 = vadd.f32 %v51, 1e-07
    %v66 = vrcp.pop %v64
    %v67 = vmul.f32 %v48, %v66
    %v68 = vrcp.pop %v65
    %v69 = vmul.f32 %v49, %v68
    %70 = vst [vmem:[#allocation11] sm:$0xff] %v67
    %71 = vst [vmem:[#allocation11 + $0x8] sm:$0xff] %v69
    %vm72 = vcmp.gt.f32.partialorder %v48, %v50
    %vm73 = vcmp.gt.f32.partialorder %v49, %v51
    %v74 = vsel %vm72, 1, 0
    %v75 = vsel %vm73, 1, 0
    %v76 = vpack.c.b16 %v75, %v74
    %v77 = vpack.c.b8 %v76, %v76
    %vm78 = vnez %v77
    %v79 = vsel %vm78, 16843009, 0
    %v81 = vunpack.c.l.s4 1966171168
    %v82 = vunpack.c.0.s8 %v81
    %v83 = vlaneseq
    %v84 = vshrl.u32 %v83, 7
    %v85 = vsub.s32 %v82, %v84
    %v86 = vrot.slane %v79, %v85
    %v87 = vcombine.high %v86, %v86
    %v89 = vunpack.c.l.s4 1966171168
    %v90 = vunpack.c.0.s8 %v89
    %v91 = vlaneseq
    %v92 = vshrl.u32 %v91, 7
    %v93 = vsub.s32 %v90, %v92
    %v94 = vrot.slane %v86, %v93
    %v96 = vunpack.c.l.s4 1966171168
    %v97 = vunpack.c.0.s8 %v96
    %v98 = vlaneseq
    %v99 = vshrl.u32 %v98, 7
    %v100 = vsub.s32 %v97, %v99
    %v101 = vrot.slane %v87, %v100
    %v102 = vcombine.high %v94, %v94
    %v103 = vcombine.high %v101, %v101
    %vm104 = vnez %v94
    %vm105 = vnez %v101
    %vm106 = vnez %v102
    %vm107 = vnez %v103
    %v108 = vsel %vm104, 16843009, 0
    %v109 = vsel %vm105, 16843009, 0
    %v110 = vsel %vm106, 16843009, 0
    %v111 = vsel %vm107, 16843009, 0
    %v112 = vcombine.low %v108, %v109
    %v113 = vcombine.low %v110, %v111
    %v115 = vunpack.c.l.s4 1966171168
    %v116 = vunpack.c.0.s8 %v115
    %v117 = vlaneseq
    %v118 = vshrl.u32 %v117, 7
    %v119 = vsub.s32 %v116, %v118
    %v120 = vrot.slane %v112, %v119
    %v122 = vunpack.c.l.s4 1966171168
    %v123 = vunpack.c.0.s8 %v122
    %v124 = vlaneseq
    %v125 = vshrl.u32 %v124, 7
    %v126 = vsub.s32 %v123, %v125
    %v127 = vrot.slane %v113, %v126
    %v128 = vcombine.low %v120, %v127
    %v130 = vunpack.c.l.s4 1966171168
    %v131 = vunpack.c.0.s8 %v130
    %v132 = vlaneseq
    %v133 = vshrl.u32 %v132, 7
    %v134 = vsub.s32 %v131, %v133
    %v135 = vrot.slane %v128, %v134
    %136 = vst [vmem:[#allocation13] sm:$0xf] %v135
    %vm137 = vcmp.lt.f32.partialorder %v48, %v50
    %vm138 = vcmp.lt.f32.partialorder %v49, %v51
    %v139 = vsel %vm137, 1, 0
    %v140 = vsel %vm138, 1, 0
    %v141 = vpack.c.b16 %v140, %v139
    %v142 = vpack.c.b8 %v141, %v141
    %vm143 = vnez %v142
    %v144 = vsel %vm143, 16843009, 0
    %v146 = vunpack.c.l.s4 1966171168
    %v147 = vunpack.c.0.s8 %v146
    %v148 = vlaneseq
    %v149 = vshrl.u32 %v148, 7
    %v150 = vsub.s32 %v147, %v149
    %v151 = vrot.slane %v144, %v150
    %v152 = vcombine.high %v151, %v151
    %v154 = vunpack.c.l.s4 1966171168
    %v155 = vunpack.c.0.s8 %v154
    %v156 = vlaneseq
    %v157 = vshrl.u32 %v156, 7
    %v158 = vsub.s32 %v155, %v157
    %v159 = vrot.slane %v151, %v158
    %v161 = vunpack.c.l.s4 1966171168
    %v162 = vunpack.c.0.s8 %v161
    %v163 = vlaneseq
    %v164 = vshrl.u32 %v163, 7
    %v165 = vsub.s32 %v162, %v164
    %v166 = vrot.slane %v152, %v165
    %v167 = vcombine.high %v159, %v159
    %v168 = vcombine.high %v166, %v166
    %vm169 = vnez %v159
    %vm170 = vnez %v166
    %vm171 = vnez %v167
    %vm172 = vnez %v168
    %v173 = vsel %vm169, 16843009, 0
    %v174 = vsel %vm170, 16843009, 0
    %v175 = vsel %vm171, 16843009, 0
    %v176 = vsel %vm172, 16843009, 0
    %v177 = vcombine.low %v173, %v174
    %v178 = vcombine.low %v175, %v176
    %v180 = vunpack.c.l.s4 1966171168
    %v181 = vunpack.c.0.s8 %v180
    %v182 = vlaneseq
    %v183 = vshrl.u32 %v182, 7
    %v184 = vsub.s32 %v181, %v183
    %v185 = vrot.slane %v177, %v184
    %v187 = vunpack.c.l.s4 1966171168
    %v188 = vunpack.c.0.s8 %v187
    %v189 = vlaneseq
    %v190 = vshrl.u32 %v189, 7
    %v191 = vsub.s32 %v188, %v190
    %v192 = vrot.slane %v178, %v191
    %v193 = vcombine.low %v185, %v192
    %v195 = vunpack.c.l.s4 1966171168
    %v196 = vunpack.c.0.s8 %v195
    %v197 = vlaneseq
    %v198 = vshrl.u32 %v197, 7
    %v199 = vsub.s32 %v196, %v198
    %v200 = vrot.slane %v193, %v199
    %201 = vst [vmem:[#allocation14] sm:$0xf] %v200
    %vm202 = vcmp.eq.f32.partialorder %v48, %v50
    %vm203 = vcmp.eq.f32.partialorder %v49, %v51
    %v204 = vsel %vm202, 1, 0
    %v205 = vsel %vm203, 1, 0
    %v206 = vpack.c.b16 %v205, %v204
    %v207 = vpack.c.b8 %v206, %v206
    %vm208 = vnez %v207
    %v209 = vsel %vm208, 16843009, 0
    %v211 = vunpack.c.l.s4 1966171168
    %v212 = vunpack.c.0.s8 %v211
    %v213 = vlaneseq
    %v214 = vshrl.u32 %v213, 7
    %v215 = vsub.s32 %v212, %v214
    %v216 = vrot.slane %v209, %v215
    %v217 = vcombine.high %v216, %v216
    %v219 = vunpack.c.l.s4 1966171168
    %v220 = vunpack.c.0.s8 %v219
    %v221 = vlaneseq
    %v222 = vshrl.u32 %v221, 7
    %v223 = vsub.s32 %v220, %v222
    %v224 = vrot.slane %v216, %v223
    %v226 = vunpack.c.l.s4 1966171168
    %v227 = vunpack.c.0.s8 %v226
    %v228 = vlaneseq
    %v229 = vshrl.u32 %v228, 7
    %v230 = vsub.s32 %v227, %v229
    %v231 = vrot.slane %v217, %v230
    %v232 = vcombine.high %v224, %v224
    %v233 = vcombine.high %v231, %v231
    %vm234 = vnez %v224
    %vm235 = vnez %v231
    %vm236 = vnez %v232
    %vm237 = vnez %v233
    %v238 = vsel %vm234, 16843009, 0
    %v239 = vsel %vm235, 16843009, 0
    %v240 = vsel %vm236, 16843009, 0
    %v241 = vsel %vm237, 16843009, 0
    %v242 = vcombine.low %v238, %v239
    %v243 = vcombine.low %v240, %v241
    %v245 = vunpack.c.l.s4 1966171168
    %v246 = vunpack.c.0.s8 %v245
    %v247 = vlaneseq
    %v248 = vshrl.u32 %v247, 7
    %v249 = vsub.s32 %v246, %v248
    %v250 = vrot.slane %v242, %v249
    %v252 = vunpack.c.l.s4 1966171168
    %v253 = vunpack.c.0.s8 %v252
    %v254 = vlaneseq
    %v255 = vshrl.u32 %v254, 7
    %v256 = vsub.s32 %v253, %v255
    %v257 = vrot.slane %v243, %v256
    %v258 = vcombine.low %v250, %v257
    %v260 = vunpack.c.l.s4 1966171168
    %v261 = vunpack.c.0.s8 %v260
    %v262 = vlaneseq
    %v263 = vshrl.u32 %v262, 7
    %v264 = vsub.s32 %v261, %v263
    %v265 = vrot.slane %v258, %v264
    %266 = vst [vmem:[#allocation16] sm:$0xf] %v265
    // Predicated region
    $region18: #{tpu_custom_call.1} parent=1 // pred_check
      _
    $region19: #{tpu_custom_call.1} parent=1 // pred_check_branch
      %268 = sbr.rel (0) target = $region21
    $region20: #{tpu_custom_call.1} parent=1 // pred_region
      %s270 = ssub.s32 256, 256
      %271 = vsyncadd [#allocation4], %s270
      %s273 = sshll.u32 [#allocation7], 4
      %s274 = int_to_ptr.vmem [resolvable:$true] %s273
      %276 = dma.vmem_to_hbm [thread:$0]  %s274, 256, %s2, [#allocation4]
    $region21: #{tpu_custom_call.1} parent=1 // pred_fallthru
      _
    // Predicated region
    $region22: #{tpu_custom_call.1} parent=1 // pred_check
      _
    $region23: #{tpu_custom_call.1} parent=1 // pred_check_branch
      %278 = sbr.rel (0) target = $region25
    $region24: #{tpu_custom_call.1} parent=1 // pred_region
      %s280 = ssub.s32 256, 256
      %281 = vsyncadd [#allocation9], %s280
      %s283 = sshll.u32 [#allocation8], 4
      %s284 = int_to_ptr.vmem [resolvable:$true] %s283
      %286 = dma.vmem_to_hbm [thread:$0]  %s284, 256, %s3, [#allocation9]
    $region25: #{tpu_custom_call.1} parent=1 // pred_fallthru
      _
    // Predicated region
    $region26: #{tpu_custom_call.1} parent=1 // pred_check
      _
    $region27: #{tpu_custom_call.1} parent=1 // pred_check_branch
      %288 = sbr.rel (0) target = $region29
    $region28: #{tpu_custom_call.1} parent=1 // pred_region
      %s290 = ssub.s32 256, 256
      %291 = vsyncadd [#allocation9], %s290
      %s293 = sshll.u32 [#allocation10], 4
      %s294 = int_to_ptr.vmem [resolvable:$true] %s293
      %296 = dma.vmem_to_hbm [thread:$0]  %s294, 256, %s4, [#allocation9]
    $region29: #{tpu_custom_call.1} parent=1 // pred_fallthru
      _
    // Predicated region
    $region30: #{tpu_custom_call.1} parent=1 // pred_check
      _
    $region31: #{tpu_custom_call.1} parent=1 // pred_check_branch
      %298 = sbr.rel (0) target = $region33
    $region32: #{tpu_custom_call.1} parent=1 // pred_region
      %s300 = ssub.s32 256, 256
      %301 = vsyncadd [#allocation12], %s300
      %s303 = sshll.u32 [#allocation11], 4
      %s304 = int_to_ptr.vmem [resolvable:$true] %s303
      %306 = dma.vmem_to_hbm [thread:$0]  %s304, 256, %s5, [#allocation12]
    $region33: #{tpu_custom_call.1} parent=1 // pred_fallthru
      _
    // Predicated region
    $region34: #{tpu_custom_call.1} parent=1 // pred_check
      _
    $region35: #{tpu_custom_call.1} parent=1 // pred_check_branch
      %308 = sbr.rel (0) target = $region37
    $region36: #{tpu_custom_call.1} parent=1 // pred_region
      %s310 = ssub.s32 64, 64
      %311 = vsyncadd [#allocation12], %s310
      %s313 = sshll.u32 [#allocation13], 4
      %s314 = int_to_ptr.vmem [resolvable:$true] %s313
      %316 = dma.vmem_to_hbm [thread:$0]  %s314, 64, %s6, [#allocation12]
    $region37: #{tpu_custom_call.1} parent=1 // pred_fallthru
      _
    // Predicated region
    $region38: #{tpu_custom_call.1} parent=1 // pred_check
      _
    $region39: #{tpu_custom_call.1} parent=1 // pred_check_branch
      %318 = sbr.rel (0) target = $region41
    $region40: #{tpu_custom_call.1} parent=1 // pred_region
      %s320 = ssub.s32 64, 64
      %321 = vsyncadd [#allocation15], %s320
      %s323 = sshll.u32 [#allocation14], 4
      %s324 = int_to_ptr.vmem [resolvable:$true] %s323
      %326 = dma.vmem_to_hbm [thread:$0]  %s324, 64, %s7, [#allocation15]
    $region41: #{tpu_custom_call.1} parent=1 // pred_fallthru
      _
    // Predicated region
    $region42: #{tpu_custom_call.1} parent=1 // pred_check
      _
    $region43: #{tpu_custom_call.1} parent=1 // pred_check_branch
      %328 = sbr.rel (0) target = $region45
    $region44: #{tpu_custom_call.1} parent=1 // pred_region
      %s330 = ssub.s32 64, 64
      %331 = vsyncadd [#allocation15], %s330
      %s333 = sshll.u32 [#allocation16], 4
      %s334 = int_to_ptr.vmem [resolvable:$true] %s333
      %336 = dma.vmem_to_hbm [thread:$0]  %s334, 64, %s8, [#allocation15]
    $region45: #{tpu_custom_call.1} parent=1 // pred_fallthru
      _
    // Predicated region
    $region46: #{tpu_custom_call.1} parent=1 // pred_check
      _
    $region47: #{tpu_custom_call.1} parent=1 // pred_check_branch
      %338 = sbr.rel (0) target = $region49
    $region48: #{tpu_custom_call.1} parent=1 // pred_region
      %339 = dma.done [#allocation4], 256
    $region49: #{tpu_custom_call.1} parent=1 // pred_fallthru
      _
    // Predicated region
    $region50: #{tpu_custom_call.1} parent=1 // pred_check
      _
    $region51: #{tpu_custom_call.1} parent=1 // pred_check_branch
      %341 = sbr.rel (0) target = $region53
    $region52: #{tpu_custom_call.1} parent=1 // pred_region
      %342 = dma.done [#allocation9], 256
    $region53: #{tpu_custom_call.1} parent=1 // pred_fallthru
      _
    // Predicated region
    $region54: #{tpu_custom_call.1} parent=1 // pred_check
      _
    $region55: #{tpu_custom_call.1} parent=1 // pred_check_branch
      %344 = sbr.rel (0) target = $region57
    $region56: #{tpu_custom_call.1} parent=1 // pred_region
      %345 = dma.done [#allocation9], 256
    $region57: #{tpu_custom_call.1} parent=1 // pred_fallthru
      _
    // Predicated region
    $region58: #{tpu_custom_call.1} parent=1 // pred_check
      _
    $region59: #{tpu_custom_call.1} parent=1 // pred_check_branch
      %347 = sbr.rel (0) target = $region61
    $region60: #{tpu_custom_call.1} parent=1 // pred_region
      %348 = dma.done [#allocation12], 256
    $region61: #{tpu_custom_call.1} parent=1 // pred_fallthru
      _
    // Predicated region
    $region62: #{tpu_custom_call.1} parent=1 // pred_check
      _
    $region63: #{tpu_custom_call.1} parent=1 // pred_check_branch
      %350 = sbr.rel (0) target = $region65
    $region64: #{tpu_custom_call.1} parent=1 // pred_region
      %351 = dma.done [#allocation12], 64
    $region65: #{tpu_custom_call.1} parent=1 // pred_fallthru
      _
    // Predicated region
    $region66: #{tpu_custom_call.1} parent=1 // pred_check
      _
    $region67: #{tpu_custom_call.1} parent=1 // pred_check_branch
      %353 = sbr.rel (0) target = $region69
    $region68: #{tpu_custom_call.1} parent=1 // pred_region
      %354 = dma.done [#allocation15], 64
    $region69: #{tpu_custom_call.1} parent=1 // pred_fallthru
      _
    // Predicated region
    $region70: #{tpu_custom_call.1} parent=1 // pred_check
      _
    $region71: #{tpu_custom_call.1} parent=1 // pred_check_branch
      %356 = sbr.rel (0) target = $region73
    $region72: #{tpu_custom_call.1} parent=1 // pred_region
      %357 = dma.done [#allocation15], 64
    $region73: #{tpu_custom_call.1} parent=1 // pred_fallthru
      _
    %358 = vsyncpa [#allocation3], 1
    %359 = vsyncpa [#allocation6], 1
    %360 = vsyncpa [#allocation4], 1
    %361 = vsyncpa [#allocation9], 1
    %362 = vsyncpa [#allocation12], 1
    %363 = vsyncpa [#allocation15], 1

</llo_original>
